<compile_context>
chip_gen: v5e
topology: v5e:2x2
jax: 0.10.0
libtpu: 0.0.40
codegen_flags: <defaults>
</compile_context>

<pallas_src>
import functools

import jax
import jax.numpy as jnp
from jax import lax
from jax.experimental import pallas as pl
from jax.experimental.pallas import tpu as pltpu

_LANE = 128
_SUBLANE = 8


def _round_up(x, m):
    return ((x + m - 1) // m) * m


def _cdiv(a, b):
    return (a + b - 1) // b


def _gelu_exact(x):
    # torch.nn.GELU default: 0.5 * x * (1 + erf(x / sqrt(2)))
    return 0.5 * x * (1.0 + lax.erf(x * 0.7071067811865476))


def _activation(x, act_fn, approximate_gelu):
    if act_fn == "relu":
        return jnp.maximum(x, 0.0)
    if act_fn == "tanh":
        return jnp.tanh(x)
    if approximate_gelu:
        # tanh-form GELU runs on the EUP slot (useful when VALU-bound).
        return jax.nn.gelu(x, approximate=True)
    return _gelu_exact(x)


def _compare_kernel(xa_ref, xb_ref, w1_ref, b1_ref, w2_ref, b2_ref,
                    va_ref, vb_ref, *, act_fn, approximate_gelu):
    # xa/xb: [tile_r, F]   (F = feat_x + feat_y, concat already fused)
    # w1: [F, Hp], w2: [Hp, Hp]  (compute dtype), b1/b2: [1, Hp] (f32)
    w1 = w1_ref[...]
    w2 = w2_ref[...]
    b1 = b1_ref[...]
    b2 = b2_ref[...]

    def mlp(x):
        h = jnp.dot(x.astype(w1.dtype), w1,
                    preferred_element_type=jnp.float32) + b1
        h = _activation(h, act_fn, approximate_gelu)
        o = jnp.dot(h.astype(w2.dtype), w2,
                    preferred_element_type=jnp.float32) + b2
        return _activation(o, act_fn, approximate_gelu)

    va_ref[...] = mlp(xa_ref[...]).astype(va_ref.dtype)
    vb_ref[...] = mlp(xb_ref[...]).astype(vb_ref.dtype)


def _pick_tile_r(rows):
    # Big tiles amortize the ~0.35us per-grid-step overhead; keep >=4 steps
    # when rows allow (>=2 needed so the "parallel" axis can shard across
    # v7x's two TensorCores and the pipeline stays warm). Sublane aligned.
    t = _round_up(max(1, _cdiv(rows, 4)), _SUBLANE)
    t = min(t, 2048)
    t = min(t, _round_up(rows, _SUBLANE))
    return max(t, _SUBLANE)


@functools.partial(jax.jit,
                   static_argnames=("hidden_size", "act_fn", "approximate_gelu"))
def _xapi_compare_forward(A, B, beta, alpha, w1, b1, w2, b2, *,
                          hidden_size, act_fn, approximate_gelu):
    b, s, fx = A.shape
    fy = beta.shape[-1]
    rows = b * s
    F = fx + fy
    Hp = w1.shape[1]
    out_dtype = w1.dtype  # compute dtype governs the output dtype (f32 / bf16)

    # Fuse torch.cat into a single dense-K operand: for small feature widths
    # one K=F dot costs one MXU K-slab where a split-W1 form costs two. (For
    # feature widths that are already 128-multiples a split-W1 kernel would
    # avoid this copy; at the widths this module uses, this is the better
    # trade.) The concat lives inside the jit so XLA emits one fused copy.
    XA = jnp.concatenate([A, beta], axis=-1).reshape(rows, F)
    XB = jnp.concatenate([B, alpha], axis=-1).reshape(rows, F)

    tile_r = _pick_tile_r(rows)
    grid = (_cdiv(rows, tile_r),)

    # No jnp.pad of inputs / outputs: Pallas handles the ragged last row block
    # (OOB loads are scratch rows, OOB stores are masked) and every output row
    # depends only on its matching input row.
    x_spec = pl.BlockSpec((tile_r, F), lambda i: (i, 0))
    o_spec = pl.BlockSpec((tile_r, Hp), lambda i: (i, 0))

    def resident(shape):
        # Constant index map -> block stays VMEM-resident across the grid;
        # single-buffered so weights don't pay 2x VMEM (v7x: 64 MiB budget).
        return pl.BlockSpec(shape, lambda i: (0, 0),
                            pipeline_mode=pl.Buffered(1))

    act_b = jnp.dtype(XA.dtype).itemsize
    w_b = jnp.dtype(w1.dtype).itemsize
    out_b = jnp.dtype(out_dtype).itemsize
    est = (2 * 2 * tile_r * F * act_b          # two double-buffered input tiles
           + 2 * 2 * tile_r * Hp * out_b       # two double-buffered output tiles
           + (F * Hp + Hp * Hp) * w_b          # single-buffered resident weights
           + 2 * Hp * 4                        # f32 biases
           + 6 * tile_r * Hp * 4)              # f32 intermediates headroom
    try:
        vmem_cap = int(pltpu.get_tpu_info().vmem_capacity_bytes)
    except Exception:
        vmem_cap = 64 << 20  # conservative fallback: v7x per-TensorCore VMEM
    vmem_limit = int(min(max(est + (8 << 20), 32 << 20), int(0.9 * vmem_cap)))
    # TODO(synk): for very large hidden (Hp*Hp*w_bytes approaching VMEM) W2
    # should get its own column-tile grid axis instead of staying resident.

    kernel = functools.partial(_compare_kernel, act_fn=act_fn,
                               approximate_gelu=approximate_gelu)

    va, vb = pl.pallas_call(
        kernel,
        out_shape=(jax.ShapeDtypeStruct((rows, Hp), out_dtype),
                   jax.ShapeDtypeStruct((rows, Hp), out_dtype)),
        grid_spec=pltpu.PrefetchScalarGridSpec(
            num_scalar_prefetch=0,
            grid=grid,
            in_specs=[
                x_spec,                    # [A ; beta] tile
                x_spec,                    # [B ; alpha] tile
                resident((F, Hp)),         # W1
                resident((1, Hp)),         # b1 (f32)
                resident((Hp, Hp)),        # W2
                resident((1, Hp)),         # b2 (f32)
            ],
            out_specs=[o_spec, o_spec],
        ),
        compiler_params=pltpu.CompilerParams(
            dimension_semantics=("parallel",),
            vmem_limit_bytes=vmem_limit),
    )(XA, XB, w1, b1, w2, b2)

    H = hidden_size
    # Inside the jit: when Hp == H these slices are identities XLA elides.
    V_A = va[:, :H].reshape(b, s, H)
    V_B = vb[:, :H].reshape(b, s, H)
    return V_A, V_B


class XAPIComparePallas:
    """JAX/Pallas port of XAPICompare (inference: dropout = identity)."""

    def __init__(self, input_size: int, hidden_size: int, drop_prob: float,
                 act_fn: str = "gelu", key=None,
                 compute_dtype=jnp.float32, approximate_gelu: bool = False):
        assert act_fn in ("relu", "gelu", "tanh")
        # TODO(synk): dropout1/dropout2 (drop_prob) are identity at inference;
        # training-mode dropout is not implemented in the kernel.
        if key is None:
            key = jax.random.PRNGKey(0)
        k1, k2, k3, k4 = jax.random.split(key, 4)
        lim1 = 1.0 / float(input_size) ** 0.5
        lim2 = 1.0 / float(hidden_size) ** 0.5

        hidden_pad = _round_up(hidden_size, _LANE)
        w1 = jax.random.uniform(k1, (input_size, hidden_size), jnp.float32, -lim1, lim1)
        b1 = jax.random.uniform(k2, (1, hidden_size), jnp.float32, -lim1, lim1)
        w2 = jax.random.uniform(k3, (hidden_size, hidden_size), jnp.float32, -lim2, lim2)
        b2 = jax.random.uniform(k4, (1, hidden_size), jnp.float32, -lim2, lim2)

        # Stored [in, out] (transposed vs torch [out, in]); hidden axis padded
        # to 128 lanes (padded columns stay act(0)=0 and are sliced off).
        # Weights kept in compute_dtype (bf16 fast path halves resident VMEM
        # and output HBM writes); biases stay f32 (added to f32 accumulator).
        cd = compute_dtype
        self.w1 = (jnp.zeros((input_size, hidden_pad), jnp.float32)
                   .at[:, :hidden_size].set(w1).astype(cd))
        self.b1 = jnp.zeros((1, hidden_pad), jnp.float32).at[:, :hidden_size].set(b1)
        self.w2 = (jnp.zeros((hidden_pad, hidden_pad), jnp.float32)
                   .at[:hidden_size, :hidden_size].set(w2).astype(cd))
        self.b2 = jnp.zeros((1, hidden_pad), jnp.float32).at[:, :hidden_size].set(b2)

        self.input_size = input_size
        self.hidden_size = hidden_size
        self.hidden_pad = hidden_pad
        self.act_fn = act_fn
        self.approximate_gelu = approximate_gelu
        self.compute_dtype = cd

    def __call__(self, A, B, beta, alpha):
        assert A.shape[-1] + beta.shape[-1] == self.input_size
        assert B.shape == A.shape and alpha.shape == beta.shape
        return _xapi_compare_forward(
            A, B, beta, alpha, self.w1, self.b1, self.w2, self.b2,
            hidden_size=self.hidden_size, act_fn=self.act_fn,
            approximate_gelu=self.approximate_gelu)


if __name__ == "__main__":
    key = jax.random.PRNGKey(0)
    k_a, k_b, k_beta, k_alpha, k_params = jax.random.split(key, 5)

    batch, seq, feat = 2, 8, 16          # concat along dim=2 -> input_size = 32
    input_size, hidden_size = 2 * feat, 32

    A = jax.random.normal(k_a, (batch, seq, feat), jnp.float32)
    B = jax.random.normal(k_b, (batch, seq, feat), jnp.float32)
    beta = jax.random.normal(k_beta, (batch, seq, feat), jnp.float32)
    alpha = jax.random.normal(k_alpha, (batch, seq, feat), jnp.float32)

    # Default f32 path (matches torch exact-erf GELU math to tight tolerance).
    model = XAPIComparePallas(input_size, hidden_size, drop_prob=0.1,
                              act_fn="gelu", key=k_params)
    V_A, V_B = model(A, B, beta, alpha)
    jax.block_until_ready((V_A, V_B))

    # Pure-JAX reference (unpadded weights, explicit concat).
    H = hidden_size
    w1u = model.w1[:, :H].astype(jnp.float32)
    b1u = model.b1[0, :H]
    w2u = model.w2[:H, :H].astype(jnp.float32)
    b2u = model.b2[0, :H]

    def ref_compute(x):
        h = _gelu_exact(jnp.einsum("bsf,fh->bsh", x, w1u) + b1u)
        return _gelu_exact(jnp.einsum("bsf,fh->bsh", h, w2u) + b2u)

    ref_A = ref_compute(jnp.concatenate([A, beta], axis=2))
    ref_B = ref_compute(jnp.concatenate([B, alpha], axis=2))

    assert V_A.shape == (batch, seq, hidden_size)
    assert V_B.shape == (batch, seq, hidden_size)
    assert jnp.allclose(V_A, ref_A, atol=1e-5), "V_A mismatch (f32 path)"
    assert jnp.allclose(V_B, ref_B, atol=1e-5), "V_B mismatch (f32 path)"

    # Reduced-precision fast path (bf16 weights/operands/outputs, f32 accum).
    model_bf16 = XAPIComparePallas(input_size, hidden_size, drop_prob=0.1,
                                   act_fn="gelu", key=k_params,
                                   compute_dtype=jnp.bfloat16)
    VA16, VB16 = model_bf16(A, B, beta, alpha)
    jax.block_until_ready((VA16, VB16))
    assert VA16.dtype == jnp.bfloat16 and VB16.dtype == jnp.bfloat16
    assert jnp.allclose(VA16.astype(jnp.float32), ref_A, atol=5e-2, rtol=5e-2), \
        "V_A mismatch (bf16 path)"
    assert jnp.allclose(VB16.astype(jnp.float32), ref_B, atol=5e-2, rtol=5e-2), \
        "V_B mismatch (bf16 path)"

    print("KERNEL_OK")
</pallas_src>

<mosaic_0001>
module attributes {stable_mosaic.version = 11 : i64} {
  func.func @_compare_kernel(%arg0: i32, %arg1: memref<8x32xf32, #tpu.memory_space<vmem>>, %arg2: memref<8x32xf32, #tpu.memory_space<vmem>>, %arg3: memref<32x128xf32, #tpu.memory_space<vmem>>, %arg4: memref<1x128xf32, #tpu.memory_space<vmem>>, %arg5: memref<128x128xf32, #tpu.memory_space<vmem>>, %arg6: memref<1x128xf32, #tpu.memory_space<vmem>>, %arg7: memref<8x128xf32, #tpu.memory_space<vmem>>, %arg8: memref<8x128xf32, #tpu.memory_space<vmem>>) attributes {dimension_semantics = [#tpu.dimension_semantics<parallel>], iteration_bounds = array<i64: 2>, scalar_prefetch = 0 : i64, scratch_operands = 0 : i64, tpu.core_type = #tpu.core_type<tc>, window_params = [{transform_indices = @transform_0, window_bounds = array<i64: 8, 32>}, {transform_indices = @transform_1, window_bounds = array<i64: 8, 32>}, {pipeline_mode = #tpu.pipeline_mode<synchronous>, transform_indices = @transform_2, window_bounds = array<i64: 32, 128>}, {pipeline_mode = #tpu.pipeline_mode<synchronous>, transform_indices = @transform_3, window_bounds = array<i64: 1, 128>}, {pipeline_mode = #tpu.pipeline_mode<synchronous>, transform_indices = @transform_4, window_bounds = array<i64: 128, 128>}, {pipeline_mode = #tpu.pipeline_mode<synchronous>, transform_indices = @transform_5, window_bounds = array<i64: 1, 128>}, {transform_indices = @transform_6, window_bounds = array<i64: 8, 128>}, {transform_indices = @transform_7, window_bounds = array<i64: 8, 128>}]} {
    %c0 = arith.constant 0 : index
    %c0_0 = arith.constant 0 : index
    %0 = vector.load %arg3[%c0, %c0_0] : memref<32x128xf32, #tpu.memory_space<vmem>>, vector<32x128xf32>
    %c0_1 = arith.constant 0 : index
    %c0_2 = arith.constant 0 : index
    %1 = vector.load %arg5[%c0_1, %c0_2] : memref<128x128xf32, #tpu.memory_space<vmem>>, vector<128x128xf32>
    %c0_3 = arith.constant 0 : index
    %c0_4 = arith.constant 0 : index
    %2 = vector.load %arg4[%c0_3, %c0_4] : memref<1x128xf32, #tpu.memory_space<vmem>>, vector<1x128xf32>
    %c0_5 = arith.constant 0 : index
    %c0_6 = arith.constant 0 : index
    %3 = vector.load %arg6[%c0_5, %c0_6] : memref<1x128xf32, #tpu.memory_space<vmem>>, vector<1x128xf32>
    %c0_7 = arith.constant 0 : index
    %c0_8 = arith.constant 0 : index
    %4 = vector.load %arg1[%c0_7, %c0_8] : memref<8x32xf32, #tpu.memory_space<vmem>>, vector<8x32xf32>
    %cst = arith.constant dense<0.000000e+00> : vector<8x128xf32>
    %5 = tpu.matmul %4, %0, %cst {dimension_numbers = #tpu.dot_dimension_numbers<[1], [0], [0], [1], [0, 0, 1, 1], [], []>} : vector<8x32xf32>, vector<32x128xf32>, vector<8x128xf32> -> vector<8x128xf32>
    %6 = vector.broadcast %2 : vector<1x128xf32> to vector<8x128xf32>
    %7 = arith.addf %5, %6 : vector<8x128xf32>
    %cst_9 = arith.constant 5.000000e-01 : f32
    %8 = vector.broadcast %cst_9 : f32 to vector<8x128xf32>
    %9 = arith.mulf %8, %7 : vector<8x128xf32>
    %cst_10 = arith.constant 0.707106769 : f32
    %10 = vector.broadcast %cst_10 : f32 to vector<8x128xf32>
    %11 = arith.mulf %7, %10 : vector<8x128xf32>
    %12 = math.erf %11 : vector<8x128xf32>
    %cst_11 = arith.constant 1.000000e+00 : f32
    %13 = vector.broadcast %cst_11 : f32 to vector<8x128xf32>
    %14 = arith.addf %13, %12 : vector<8x128xf32>
    %15 = arith.mulf %9, %14 : vector<8x128xf32>
    %cst_12 = arith.constant dense<0.000000e+00> : vector<8x128xf32>
    %16 = tpu.matmul %15, %1, %cst_12 {dimension_numbers = #tpu.dot_dimension_numbers<[1], [0], [0], [1], [0, 0, 1, 1], [], []>} : vector<8x128xf32>, vector<128x128xf32>, vector<8x128xf32> -> vector<8x128xf32>
    %17 = vector.broadcast %3 : vector<1x128xf32> to vector<8x128xf32>
    %18 = arith.addf %16, %17 : vector<8x128xf32>
    %cst_13 = arith.constant 5.000000e-01 : f32
    %19 = vector.broadcast %cst_13 : f32 to vector<8x128xf32>
    %20 = arith.mulf %19, %18 : vector<8x128xf32>
    %cst_14 = arith.constant 0.707106769 : f32
    %21 = vector.broadcast %cst_14 : f32 to vector<8x128xf32>
    %22 = arith.mulf %18, %21 : vector<8x128xf32>
    %23 = math.erf %22 : vector<8x128xf32>
    %cst_15 = arith.constant 1.000000e+00 : f32
    %24 = vector.broadcast %cst_15 : f32 to vector<8x128xf32>
    %25 = arith.addf %24, %23 : vector<8x128xf32>
    %26 = arith.mulf %20, %25 : vector<8x128xf32>
    %c0_16 = arith.constant 0 : index
    %c0_17 = arith.constant 0 : index
    %27 = vector.load %arg7[%c0_16, %c0_17] : memref<8x128xf32, #tpu.memory_space<vmem>>, vector<8x128xf32>
    tpu.vector_store %arg7[%c0_16, %c0_17], %26 {strides = array<i32>} : memref<8x128xf32, #tpu.memory_space<vmem>>, vector<8x128xf32>,
    %c0_18 = arith.constant 0 : index
    %c0_19 = arith.constant 0 : index
    %28 = vector.load %arg2[%c0_18, %c0_19] : memref<8x32xf32, #tpu.memory_space<vmem>>, vector<8x32xf32>
    %cst_20 = arith.constant dense<0.000000e+00> : vector<8x128xf32>
    %29 = tpu.matmul %28, %0, %cst_20 {dimension_numbers = #tpu.dot_dimension_numbers<[1], [0], [0], [1], [0, 0, 1, 1], [], []>} : vector<8x32xf32>, vector<32x128xf32>, vector<8x128xf32> -> vector<8x128xf32>
    %30 = vector.broadcast %2 : vector<1x128xf32> to vector<8x128xf32>
    %31 = arith.addf %29, %30 : vector<8x128xf32>
    %cst_21 = arith.constant 5.000000e-01 : f32
    %32 = vector.broadcast %cst_21 : f32 to vector<8x128xf32>
    %33 = arith.mulf %32, %31 : vector<8x128xf32>
    %cst_22 = arith.constant 0.707106769 : f32
    %34 = vector.broadcast %cst_22 : f32 to vector<8x128xf32>
    %35 = arith.mulf %31, %34 : vector<8x128xf32>
    %36 = math.erf %35 : vector<8x128xf32>
    %cst_23 = arith.constant 1.000000e+00 : f32
    %37 = vector.broadcast %cst_23 : f32 to vector<8x128xf32>
    %38 = arith.addf %37, %36 : vector<8x128xf32>
    %39 = arith.mulf %33, %38 : vector<8x128xf32>
    %cst_24 = arith.constant dense<0.000000e+00> : vector<8x128xf32>
    %40 = tpu.matmul %39, %1, %cst_24 {dimension_numbers = #tpu.dot_dimension_numbers<[1], [0], [0], [1], [0, 0, 1, 1], [], []>} : vector<8x128xf32>, vector<128x128xf32>, vector<8x128xf32> -> vector<8x128xf32>
    %41 = vector.broadcast %3 : vector<1x128xf32> to vector<8x128xf32>
    %42 = arith.addf %40, %41 : vector<8x128xf32>
    %cst_25 = arith.constant 5.000000e-01 : f32
    %43 = vector.broadcast %cst_25 : f32 to vector<8x128xf32>
    %44 = arith.mulf %43, %42 : vector<8x128xf32>
    %cst_26 = arith.constant 0.707106769 : f32
    %45 = vector.broadcast %cst_26 : f32 to vector<8x128xf32>
    %46 = arith.mulf %42, %45 : vector<8x128xf32>
    %47 = math.erf %46 : vector<8x128xf32>
    %cst_27 = arith.constant 1.000000e+00 : f32
    %48 = vector.broadcast %cst_27 : f32 to vector<8x128xf32>
    %49 = arith.addf %48, %47 : vector<8x128xf32>
    %50 = arith.mulf %44, %49 : vector<8x128xf32>
    %c0_28 = arith.constant 0 : index
    %c0_29 = arith.constant 0 : index
    %51 = vector.load %arg8[%c0_28, %c0_29] : memref<8x128xf32, #tpu.memory_space<vmem>>, vector<8x128xf32>
    tpu.vector_store %arg8[%c0_28, %c0_29], %50 {strides = array<i32>} : memref<8x128xf32, #tpu.memory_space<vmem>>, vector<8x128xf32>,
    return
  }
  func.func @transform_0(%arg0: i32) -> (i32, i32) {
    %c0_i32 = arith.constant 0 : i32
    %c0_i32_0 = arith.constant 0 : i32
    return %arg0, %c0_i32 : i32, i32
  }
  func.func @transform_1(%arg0: i32) -> (i32, i32) {
    %c0_i32 = arith.constant 0 : i32
    %c0_i32_0 = arith.constant 0 : i32
    return %arg0, %c0_i32 : i32, i32
  }
  func.func @transform_2(%arg0: i32) -> (i32, i32) {
    %c0_i32 = arith.constant 0 : i32
    %c0_i32_0 = arith.constant 0 : i32
    %c0_i32_1 = arith.constant 0 : i32
    return %c0_i32, %c0_i32_0 : i32, i32
  }
  func.func @transform_3(%arg0: i32) -> (i32, i32) {
    %c0_i32 = arith.constant 0 : i32
    %c0_i32_0 = arith.constant 0 : i32
    %c0_i32_1 = arith.constant 0 : i32
    return %c0_i32, %c0_i32_0 : i32, i32
  }
  func.func @transform_4(%arg0: i32) -> (i32, i32) {
    %c0_i32 = arith.constant 0 : i32
    %c0_i32_0 = arith.constant 0 : i32
    %c0_i32_1 = arith.constant 0 : i32
    return %c0_i32, %c0_i32_0 : i32, i32
  }
  func.func @transform_5(%arg0: i32) -> (i32, i32) {
    %c0_i32 = arith.constant 0 : i32
    %c0_i32_0 = arith.constant 0 : i32
    %c0_i32_1 = arith.constant 0 : i32
    return %c0_i32, %c0_i32_0 : i32, i32
  }
  func.func @transform_6(%arg0: i32) -> (i32, i32) {
    %c0_i32 = arith.constant 0 : i32
    %c0_i32_0 = arith.constant 0 : i32
    return %arg0, %c0_i32 : i32, i32
  }
  func.func @transform_7(%arg0: i32) -> (i32, i32) {
    %c0_i32 = arith.constant 0 : i32
    %c0_i32_0 = arith.constant 0 : i32
    return %arg0, %c0_i32 : i32, i32
  }
}

</mosaic_0001>

<llo_original>
// kernel: _xapi_compare_forward.1
$region0: #{_xapi_compare_forward.1}
  #allocation0 [shape = 'u32[]', space=smem, size = 0x4, offset = 0x4, fixed_abs, tag = 'smem constant byte address 0x4 - core index']
  #allocation1 [shape = 'u32[72,128]{1,0:T(1,128)}', space=vmem, size = 0x9000, scoped, tag = 'internal scratch']
  %s0 = inlined_call_operand.vmem [shape: f32[16,32], index: 0, kind: input, shape index: {}]
  %s1 = inlined_call_operand.vmem [shape: f32[16,32], index: 1, kind: input, shape index: {}]
  %s2 = inlined_call_operand.vmem [shape: f32[32,128], index: 2, kind: input, shape index: {}]
  %s3 = inlined_call_operand.vmem [shape: f32[1,128], index: 3, kind: input, shape index: {}]
  %s4 = inlined_call_operand.hbm [shape: f32[128,128], index: 4, kind: input, shape index: {}]
  %s5 = inlined_call_operand.vmem [shape: f32[1,128], index: 5, kind: input, shape index: {}]
  %s6 = inlined_call_operand.vmem [shape: f32[16,128], index: 6, kind: output, shape index: {0}]
  %s7 = inlined_call_operand.vmem [shape: f32[16,128], index: 7, kind: output, shape index: {1}]
  %8 = xla_tuple %s6, %s7
  %s9 = sld [smem:[#allocation0]]
  $region69: #{_xapi_compare_forward.1} parent=0
    _
  %s11 = ssub.s32 1, %s9
  %s12 = scalar_select 0, %s11, %s9
  $region1: #{_xapi_compare_forward.1} parent=0
    #allocation2 [shape = 'u8[65536]{0}', space=vmem, size = 0x10000, scoped, tag = 'input window, operand 4, single buffered']
    #allocation3 [shape = 's32[2]{0}', space=sflag, size = 0x8, scoped, tag = 'scoped memory for _xapi_compare_forward.1']
    %13 = vsyncpa [#allocation3], 0
    loop: start=0, step=1, limit=4
    $region2: #{_xapi_compare_forward.1} parent=1 // loop_pre_header
      _
    $region3: #{_xapi_compare_forward.1} parent=1 // loop_header
      %s15 = sphi 0, %s19
      %p16 = scmp.ge.s32.totalorder %s15, 4
      %s25 = sphi 0, %s27
      %s28 = sphi 0, %s25
      %s29 = sphi 0, %s28
      %s45 = sphi 0, %s29
      %s51 = sphi 0, %s53
      %s54 = sphi 0, %s51
      %s55 = sphi 0, %s54
      %s71 = sphi 0, %s55
      %s75 = sphi 0, %s75
      %s77 = sphi 0, %s75
      %s78 = sphi 0, %s77
      %s92 = sphi 0, %s78
      %s96 = sphi 0, %s96
      %s98 = sphi 0, %s96
      %s99 = sphi 0, %s98
      %s113 = sphi 0, %s99
      %s117 = sphi 0, %s117
      %s119 = sphi 0, %s117
      %s120 = sphi 0, %s119
      %s134 = sphi 0, %s120
      %s138 = sphi 0, %s138
      %s140 = sphi 0, %s138
      %s141 = sphi 0, %s140
      %s155 = sphi 0, %s141
      %s161 = sphi 0, %s163
      %s164 = sphi 0, %s161
      %s165 = sphi 0, %s164
      %s181 = sphi 0, %s165
      %s187 = sphi 0, %s189
      %s190 = sphi 0, %s187
      %s191 = sphi 0, %s190
      %s207 = sphi 0, %s191
    $region4: #{_xapi_compare_forward.1} parent=1 // loop_header_branch
      %18 = sbr.rel (%p16) target = $region8
    $region5: #{_xapi_compare_forward.1} parent=1 // loop_body
      %s20 = ssub.s32 %s15, 1
      %s21 = ssub.s32 %s15, 2
      %s22 = sadd.s32 %s15, 1
      %s23 = ssub.s32 %s15, %s22
      %p24 = scmp.eq.s32.totalorder %s23, 0
      %s26 = sadd.s32 %s25, 1
      %s27 = scalar_select %p24, %s25, %s26
      %p30 = pneg %p24
      %p31 = scmp.eq.s32.totalorder %s15, 1
      %p32 = por %p30, %p31
      %p33 = scmp.ne.s32.totalorder %s25, %s28
      %p34 = scmp.eq.s32.totalorder %s15, 0
      %p35 = por %p33, %p34
      %p36 = scmp.ne.s32.totalorder %s25, %s28
      %p37 = scmp.eq.s32.totalorder %s20, 1
      %p38 = por %p36, %p37
      %p39 = scmp.ne.s32.totalorder %s28, %s29
      %p40 = scmp.eq.s32.totalorder %s20, 0
      %p41 = por %p39, %p40
      %p42 = scmp.ne.s32.totalorder %s28, %s29
      %p43 = scmp.eq.s32.totalorder %s21, 1
      %p44 = por %p42, %p43
      %p46 = scmp.ne.s32.totalorder %s29, %s45
      %p47 = scmp.eq.s32.totalorder %s21, 0
      %p48 = por %p46, %p47
      %s49 = ssub.s32 %s15, %s22
      %p50 = scmp.eq.s32.totalorder %s49, 0
      %s52 = sadd.s32 %s51, 1
      %s53 = scalar_select %p50, %s51, %s52
      %p56 = pneg %p50
      %p57 = scmp.eq.s32.totalorder %s15, 1
      %p58 = por %p56, %p57
      %p59 = scmp.ne.s32.totalorder %s51, %s54
      %p60 = scmp.eq.s32.totalorder %s15, 0
      %p61 = por %p59, %p60
      %p62 = scmp.ne.s32.totalorder %s51, %s54
      %p63 = scmp.eq.s32.totalorder %s20, 1
      %p64 = por %p62, %p63
      %p65 = scmp.ne.s32.totalorder %s54, %s55
      %p66 = scmp.eq.s32.totalorder %s20, 0
      %p67 = por %p65, %p66
      %p68 = scmp.ne.s32.totalorder %s54, %s55
      %p69 = scmp.eq.s32.totalorder %s21, 1
      %p70 = por %p68, %p69
      %p72 = scmp.ne.s32.totalorder %s55, %s71
      %p73 = scmp.eq.s32.totalorder %s21, 0
      %p74 = por %p72, %p73
      %s76 = sadd.s32 %s75, 1
      %p79 = scmp.eq.s32.totalorder %s15, 1
      %p80 = scmp.ne.s32.totalorder %s75, %s77
      %p81 = scmp.eq.s32.totalorder %s15, 0
      %p82 = por %p80, %p81
      %p83 = scmp.ne.s32.totalorder %s75, %s77
      %p84 = scmp.eq.s32.totalorder %s20, 1
      %p85 = por %p83, %p84
      %p86 = scmp.ne.s32.totalorder %s77, %s78
      %p87 = scmp.eq.s32.totalorder %s20, 0
      %p88 = por %p86, %p87
      %p89 = scmp.ne.s32.totalorder %s77, %s78
      %p90 = scmp.eq.s32.totalorder %s21, 1
      %p91 = por %p89, %p90
      %p93 = scmp.ne.s32.totalorder %s78, %s92
      %p94 = scmp.eq.s32.totalorder %s21, 0
      %p95 = por %p93, %p94
      %s97 = sadd.s32 %s96, 1
      %p100 = scmp.eq.s32.totalorder %s15, 1
      %p101 = scmp.ne.s32.totalorder %s96, %s98
      %p102 = scmp.eq.s32.totalorder %s15, 0
      %p103 = por %p101, %p102
      %p104 = scmp.ne.s32.totalorder %s96, %s98
      %p105 = scmp.eq.s32.totalorder %s20, 1
      %p106 = por %p104, %p105
      %p107 = scmp.ne.s32.totalorder %s98, %s99
      %p108 = scmp.eq.s32.totalorder %s20, 0
      %p109 = por %p107, %p108
      %p110 = scmp.ne.s32.totalorder %s98, %s99
      %p111 = scmp.eq.s32.totalorder %s21, 1
      %p112 = por %p110, %p111
      %p114 = scmp.ne.s32.totalorder %s99, %s113
      %p115 = scmp.eq.s32.totalorder %s21, 0
      %p116 = por %p114, %p115
      %s118 = sadd.s32 %s117, 1
      %p121 = scmp.eq.s32.totalorder %s15, 1
      %p122 = scmp.ne.s32.totalorder %s117, %s119
      %p123 = scmp.eq.s32.totalorder %s15, 0
      %p124 = por %p122, %p123
      %p125 = scmp.ne.s32.totalorder %s117, %s119
      %p126 = scmp.eq.s32.totalorder %s20, 1
      %p127 = por %p125, %p126
      %p128 = scmp.ne.s32.totalorder %s119, %s120
      %p129 = scmp.eq.s32.totalorder %s20, 0
      %p130 = por %p128, %p129
      %p131 = scmp.ne.s32.totalorder %s119, %s120
      %p132 = scmp.eq.s32.totalorder %s21, 1
      %p133 = por %p131, %p132
      %p135 = scmp.ne.s32.totalorder %s120, %s134
      %p136 = scmp.eq.s32.totalorder %s21, 0
      %p137 = por %p135, %p136
      %s139 = sadd.s32 %s138, 1
      %p142 = scmp.eq.s32.totalorder %s15, 1
      %p143 = scmp.ne.s32.totalorder %s138, %s140
      %p144 = scmp.eq.s32.totalorder %s15, 0
      %p145 = por %p143, %p144
      %p146 = scmp.ne.s32.totalorder %s138, %s140
      %p147 = scmp.eq.s32.totalorder %s20, 1
      %p148 = por %p146, %p147
      %p149 = scmp.ne.s32.totalorder %s140, %s141
      %p150 = scmp.eq.s32.totalorder %s20, 0
      %p151 = por %p149, %p150
      %p152 = scmp.ne.s32.totalorder %s140, %s141
      %p153 = scmp.eq.s32.totalorder %s21, 1
      %p154 = por %p152, %p153
      %p156 = scmp.ne.s32.totalorder %s141, %s155
      %p157 = scmp.eq.s32.totalorder %s21, 0
      %p158 = por %p156, %p157
      %s159 = ssub.s32 %s15, %s22
      %p160 = scmp.eq.s32.totalorder %s159, 0
      %s162 = sadd.s32 %s161, 1
      %s163 = scalar_select %p160, %s161, %s162
      %p166 = pneg %p160
      %p167 = scmp.eq.s32.totalorder %s15, 1
      %p168 = por %p166, %p167
      %p169 = scmp.ne.s32.totalorder %s161, %s164
      %p170 = scmp.eq.s32.totalorder %s15, 0
      %p171 = por %p169, %p170
      %p172 = scmp.ne.s32.totalorder %s161, %s164
      %p173 = scmp.eq.s32.totalorder %s20, 1
      %p174 = por %p172, %p173
      %p175 = scmp.ne.s32.totalorder %s164, %s165
      %p176 = scmp.eq.s32.totalorder %s20, 0
      %p177 = por %p175, %p176
      %p178 = scmp.ne.s32.totalorder %s164, %s165
      %p179 = scmp.eq.s32.totalorder %s21, 1
      %p180 = por %p178, %p179
      %p182 = scmp.ne.s32.totalorder %s165, %s181
      %p183 = scmp.eq.s32.totalorder %s21, 0
      %p184 = por %p182, %p183
      %s185 = ssub.s32 %s15, %s22
      %p186 = scmp.eq.s32.totalorder %s185, 0
      %s188 = sadd.s32 %s187, 1
      %s189 = scalar_select %p186, %s187, %s188
      %p192 = pneg %p186
      %p193 = scmp.eq.s32.totalorder %s15, 1
      %p194 = por %p192, %p193
      %p195 = scmp.ne.s32.totalorder %s187, %s190
      %p196 = scmp.eq.s32.totalorder %s15, 0
      %p197 = por %p195, %p196
      %p198 = scmp.ne.s32.totalorder %s187, %s190
      %p199 = scmp.eq.s32.totalorder %s20, 1
      %p200 = por %p198, %p199
      %p201 = scmp.ne.s32.totalorder %s190, %s191
      %p202 = scmp.eq.s32.totalorder %s20, 0
      %p203 = por %p201, %p202
      %p204 = scmp.ne.s32.totalorder %s190, %s191
      %p205 = scmp.eq.s32.totalorder %s21, 1
      %p206 = por %p204, %p205
      %p208 = scmp.ne.s32.totalorder %s191, %s207
      %p209 = scmp.eq.s32.totalorder %s21, 0
      %p210 = por %p208, %p209
      %p211 = scmp.le.s32.totalorder 1, %s15
      %p212 = scmp.lt.s32.totalorder %s15, 3
      %p213 = pnand %p211, %p212
      %p214 = pneg %p213
      // Predicated region
      $region9: #{_xapi_compare_forward.1} parent=5 // pred_check
        _
      $region10: #{_xapi_compare_forward.1} parent=5 // pred_check_branch
        %216 = sbr.rel (%p213) target = $region12
      $region11: #{_xapi_compare_forward.1} parent=5 // pred_region
        %s217 = ssub.s32 %s15, 1
        // Predicated region
        $region13: #{_xapi_compare_forward.1} parent=11 // pred_check
          %p218 = pneg %p88
        $region14: #{_xapi_compare_forward.1} parent=11 // pred_check_branch
          %220 = sbr.rel (%p218) target = $region16
        $region15: #{_xapi_compare_forward.1} parent=11 // pred_region
          _
        $region16: #{_xapi_compare_forward.1} parent=11 // pred_fallthru
          _
        // Predicated region
        $region17: #{_xapi_compare_forward.1} parent=11 // pred_check
          %p221 = pneg %p109
        $region18: #{_xapi_compare_forward.1} parent=11 // pred_check_branch
          %223 = sbr.rel (%p221) target = $region20
        $region19: #{_xapi_compare_forward.1} parent=11 // pred_region
          _
        $region20: #{_xapi_compare_forward.1} parent=11 // pred_fallthru
          _
        // Predicated region
        $region21: #{_xapi_compare_forward.1} parent=11 // pred_check
          %p224 = pneg %p130
        $region22: #{_xapi_compare_forward.1} parent=11 // pred_check_branch
          %226 = sbr.rel (%p224) target = $region24
        $region23: #{_xapi_compare_forward.1} parent=11 // pred_region
          %228 = vsyncadd [#allocation3], 0
          %s229 = sshll.u32 %s4, 4
          %s230 = int_to_ptr.hbm [resolvable:$true] %s229
          %s231 = sshll.u32 [#allocation2], 4
          %s232 = int_to_ptr.vmem [resolvable:$true] %s231
          %237 = dma.hbm_to_vmem [thread:$0]  %s230, 2048, %s232, [#allocation3], 128, 128, 8
        $region24: #{_xapi_compare_forward.1} parent=11 // pred_fallthru
          _
        // Predicated region
        $region25: #{_xapi_compare_forward.1} parent=11 // pred_check
          %p238 = pneg %p151
        $region26: #{_xapi_compare_forward.1} parent=11 // pred_check_branch
          %240 = sbr.rel (%p238) target = $region28
        $region27: #{_xapi_compare_forward.1} parent=11 // pred_region
          _
        $region28: #{_xapi_compare_forward.1} parent=11 // pred_fallthru
          _
      $region12: #{_xapi_compare_forward.1} parent=5 // pred_fallthru
        _
      %p241 = scmp.lt.s32.totalorder %s15, 2
      // Predicated region
      $region29: #{_xapi_compare_forward.1} parent=5 // pred_check
        %p242 = pneg %p241
      $region30: #{_xapi_compare_forward.1} parent=5 // pred_check_branch
        %244 = sbr.rel (%p242) target = $region32
      $region31: #{_xapi_compare_forward.1} parent=5 // pred_region
        // Predicated region
        $region33: #{_xapi_compare_forward.1} parent=31 // pred_check
          %p245 = pneg %p35
        $region34: #{_xapi_compare_forward.1} parent=31 // pred_check_branch
          %247 = sbr.rel (%p245) target = $region36
        $region35: #{_xapi_compare_forward.1} parent=31 // pred_region
          %p248 = scmp.lt.s32.totalorder %s15, 1
          %s249 = scalar_select %p248, %s15, 1
          %s250 = smul.addr %s249, 8
          %s251 = scalar_lea.vmem %s0, %s250
        $region36: #{_xapi_compare_forward.1} parent=31 // pred_fallthru
          _
        // Predicated region
        $region37: #{_xapi_compare_forward.1} parent=31 // pred_check
          %p252 = pneg %p61
        $region38: #{_xapi_compare_forward.1} parent=31 // pred_check_branch
          %254 = sbr.rel (%p252) target = $region40
        $region39: #{_xapi_compare_forward.1} parent=31 // pred_region
          %p255 = scmp.lt.s32.totalorder %s15, 1
          %s256 = scalar_select %p255, %s15, 1
          %s257 = smul.addr %s256, 8
          %s258 = scalar_lea.vmem %s1, %s257
        $region40: #{_xapi_compare_forward.1} parent=31 // pred_fallthru
          _
      $region32: #{_xapi_compare_forward.1} parent=5 // pred_fallthru
        _
      %p259 = scmp.le.s32.totalorder 1, %s15
      %p260 = scmp.lt.s32.totalorder %s15, 3
      %p261 = pnand %p259, %p260
      %p262 = pneg %p261
      // Predicated region
      $region41: #{_xapi_compare_forward.1} parent=5 // pred_check
        _
      $region42: #{_xapi_compare_forward.1} parent=5 // pred_check_branch
        %264 = sbr.rel (%p261) target = $region44
      $region43: #{_xapi_compare_forward.1} parent=5 // pred_region
        %s265 = ssub.s32 %s15, 1
        // Predicated region
        $region45: #{_xapi_compare_forward.1} parent=43 // pred_check
          %p266 = pneg %p130
        $region46: #{_xapi_compare_forward.1} parent=43 // pred_check_branch
          %268 = sbr.rel (%p266) target = $region48
        $region47: #{_xapi_compare_forward.1} parent=43 // pred_region
          %270 = dma.done [#allocation3], 2048
        $region48: #{_xapi_compare_forward.1} parent=43 // pred_fallthru
          _
        %p271 = scmp.lt.s32.totalorder %s20, 1
        %s272 = scalar_select %p271, %s20, 1
        %s273 = smul.addr %s272, 8
        %s274 = scalar_lea.vmem %s0, %s273
        %p275 = pneg %p41
        %p276 = pneg %p38
        %p277 = scmp.lt.s32.totalorder %s20, 1
        %s278 = scalar_select %p277, %s20, 1
        %s279 = smul.addr %s278, 8
        %s280 = scalar_lea.vmem %s1, %s279
        %p281 = pneg %p67
        %p282 = pneg %p64
        %p283 = pneg %p88
        %p284 = pneg %p85
        %p285 = pneg %p109
        %p286 = pneg %p106
        %p287 = pneg %p130
        %p288 = pneg %p127
        %p289 = pneg %p151
        %p290 = pneg %p148
        %p291 = pneg %p177
        %p292 = pneg %p174
        %p293 = scmp.lt.s32.totalorder %s20, 1
        %s294 = scalar_select %p293, %s20, 1
        %s295 = smul.addr %s294, 8
        %s296 = scalar_lea.vmem %s6, %s295
        %p297 = pneg %p203
        %p298 = pneg %p200
        %p299 = scmp.lt.s32.totalorder %s20, 1
        %s300 = scalar_select %p299, %s20, 1
        %s301 = smul.addr %s300, 8
        %s302 = scalar_lea.vmem %s7, %s301
        %p303 = scmp.lt.s32.totalorder %s20, 1
        %s304 = scalar_select %p303, %s20, 1
        %s305 = smul.addr %s304, 8
        %s306 = scalar_lea.vmem %s0, %s305
        %p307 = scmp.lt.s32.totalorder %s20, 1
        %s308 = scalar_select %p307, %s20, 1
        %s309 = smul.addr %s308, 8
        %s310 = scalar_lea.vmem %s1, %s309
        %p311 = scmp.lt.s32.totalorder %s20, 1
        %s312 = scalar_select %p311, %s20, 1
        %s313 = smul.addr %s312, 8
        %s314 = scalar_lea.vmem %s6, %s313
        %p315 = scmp.lt.s32.totalorder %s20, 1
        %s316 = scalar_select %p315, %s20, 1
        %s317 = smul.addr %s316, 8
        %s318 = scalar_lea.vmem %s7, %s317
        %v319 = vld [vmem:[%s2] sm:$0xff]
        %v320 = vld [vmem:[%s2 + $0x8] sm:$0xff]
        %v321 = vld [vmem:[%s2 + $0x10] sm:$0xff]
        %v322 = vld [vmem:[%s2 + $0x18] sm:$0xff]
        %v323 = vld [vmem:[#allocation2] sm:$0xff]
        %v324 = vld [vmem:[#allocation2 + $0x8] sm:$0xff]
        %v325 = vld [vmem:[#allocation2 + $0x10] sm:$0xff]
        %v326 = vld [vmem:[#allocation2 + $0x18] sm:$0xff]
        %v327 = vld [vmem:[#allocation2 + $0x20] sm:$0xff]
        %v328 = vld [vmem:[#allocation2 + $0x28] sm:$0xff]
        %v329 = vld [vmem:[#allocation2 + $0x30] sm:$0xff]
        %v330 = vld [vmem:[#allocation2 + $0x38] sm:$0xff]
        %v331 = vld [vmem:[#allocation2 + $0x40] sm:$0xff]
        %v332 = vld [vmem:[#allocation2 + $0x48] sm:$0xff]
        %v333 = vld [vmem:[#allocation2 + $0x50] sm:$0xff]
        %v334 = vld [vmem:[#allocation2 + $0x58] sm:$0xff]
        %v335 = vld [vmem:[#allocation2 + $0x60] sm:$0xff]
        %v336 = vld [vmem:[#allocation2 + $0x68] sm:$0xff]
        %v337 = vld [vmem:[#allocation2 + $0x70] sm:$0xff]
        %v338 = vld [vmem:[#allocation2 + $0x78] sm:$0xff]
        %v339 = vld [vmem:[%s3] sm:$0x1]
        %v340 = vld [vmem:[%s5] sm:$0x1]
        %v341 = vld [vmem:[%s306] sm:$0xff]
        %v343 = vperm.slane %v339, 0
        %vm345 = vcmask 261120
        %v347 = vsel %vm345, %v341, 0
        %349 = vmatpush.msra.mxu0 0.0
        %350 = vmatpush.msra.mxu0 0.0
        %351 = vmatpush.msra.mxu0 0.0
        %352 = vmatpush.msra.mxu0 0.0
        %353 = vmatpush.msra.mxu0 0.0
        %354 = vmatpush.msra.mxu0 0.0
        %355 = vmatpush.msra.mxu0 0.0
        %356 = vmatpush.msra.mxu0 0.0
        %357 = vmatpush.msra.mxu0 0.0
        %358 = vmatpush.msra.mxu0 0.0
        %359 = vmatpush.msra.mxu0 0.0
        %360 = vmatpush.msra.mxu0 0.0
        %361 = vmatpush.msra.mxu0 %v322
        %362 = vmatpush.msra.mxu0 %v321
        %363 = vmatpush.msra.mxu0 %v320
        %364 = vmatpush.msra.mxu0 %v319
        %365 = vmatmul.f32.gmra.mxu0 %v347
        %v366 = vpop.f32.mrf.mxu0
        %v367 = vadd.f32 %v343, %v366
        %368 = vdwg.mxu0
        %v369 = vmul.f32 %v367, 0.5
        %v370 = vmul.f32 %v367, 0.70710677
        %v371 = vmul.f32 %v370, %v370
        %v372 = vmin.f32 16.0, %v371
        %v373 = vmul.f32 %v372, 2.1237322e-06
        %v374 = vadd.f32 %v373, 0.00028619796
        %v375 = vmul.f32 %v372, %v374
        %v376 = vadd.f32 %v375, 0.0036580483
        %v377 = vmul.f32 %v372, %v376
        %v378 = vadd.f32 %v377, 0.05243302
        %v379 = vmul.f32 %v372, %v378
        %v380 = vadd.f32 %v379, 0.18741608
        %v381 = vmul.f32 %v372, %v380
        %v382 = vadd.f32 %v381, 1.1283791
        %v383 = vmul.f32 %v370, %v382
        %v384 = vmul.f32 %v372, 3.8918573e-05
        %v385 = vadd.f32 %v384, 0.001143296
        %v386 = vmul.f32 %v372, %v385
        %v387 = vadd.f32 %v386, 0.014752088
        %v388 = vmul.f32 %v372, %v387
        %v389 = vadd.f32 %v388, 0.112945676
        %v390 = vmul.f32 %v372, %v389
        %v391 = vadd.f32 %v390, 0.4994258
        %v392 = vmul.f32 %v372, %v391
        %v393 = vadd.f32 %v392, 1.0
        %v394 = vrcp.pop %v393
        %v395 = vmul.f32 %v393, %v394
        %v396 = vsub.f32 1.0, %v395
        %v397 = vmul.f32 %v394, %v396
        %v398 = vadd.f32 %v394, %v397
        %vm399 = vweird.f32 %v393
        %vm400 = vweird.f32 %v394
        %vm401 = vmor %vm399, %vm400
        %v402 = vsel %vm401, %v394, %v398
        %v403 = vand.u32 2147483647, %v393
        %vm404 = vcmp.eq.f32.partialorder %v403, 8.507059e+37
        %v405 = vand.u32 %v393, 2147483648
        %v406 = vor.u32 1.1754944e-38, %v405
        %v407 = vsel %vm404, %v406, %v402
        %v408 = vmul.f32 %v383, %v407
        %v409 = vmin.f32 %v408, 1.0
        %v410 = vmax.f32 %v409, -1.0
        %v411 = vadd.f32 %v410, 1.0
        %v412 = vmul.f32 %v369, %v411
        %v414 = vperm.slane %v340, 0
        %416 = vmatpush.msra.mxu0 %v338
        %417 = vmatpush.msra.mxu0 %v337
        %418 = vmatpush.msra.mxu0 %v336
        %419 = vmatpush.msra.mxu0 %v335
        %420 = vmatpush.msra.mxu0 %v334
        %421 = vmatpush.msra.mxu0 %v333
        %422 = vmatpush.msra.mxu0 %v332
        %423 = vmatpush.msra.mxu0 %v331
        %424 = vmatpush.msra.mxu0 %v330
        %425 = vmatpush.msra.mxu0 %v329
        %426 = vmatpush.msra.mxu0 %v328
        %427 = vmatpush.msra.mxu0 %v327
        %428 = vmatpush.msra.mxu0 %v326
        %429 = vmatpush.msra.mxu0 %v325
        %430 = vmatpush.msra.mxu0 %v324
        %431 = vmatpush.msra.mxu0 %v323
        %432 = vmatmul.f32.gmra.mxu0 %v412
        %v433 = vpop.f32.mrf.mxu0
        %v434 = vadd.f32 %v414, %v433
        %435 = vdwg.mxu0
        %v436 = vmul.f32 %v434, 0.5
        %v437 = vmul.f32 %v434, 0.70710677
        %v438 = vmul.f32 %v437, %v437
        %v439 = vmin.f32 16.0, %v438
        %v440 = vmul.f32 %v439, 2.1237322e-06
        %v441 = vadd.f32 %v440, 0.00028619796
        %v442 = vmul.f32 %v439, %v441
        %v443 = vadd.f32 %v442, 0.0036580483
        %v444 = vmul.f32 %v439, %v443
        %v445 = vadd.f32 %v444, 0.05243302
        %v446 = vmul.f32 %v439, %v445
        %v447 = vadd.f32 %v446, 0.18741608
        %v448 = vmul.f32 %v439, %v447
        %v449 = vadd.f32 %v448, 1.1283791
        %v450 = vmul.f32 %v437, %v449
        %v451 = vmul.f32 %v439, 3.8918573e-05
        %v452 = vadd.f32 %v451, 0.001143296
        %v453 = vmul.f32 %v439, %v452
        %v454 = vadd.f32 %v453, 0.014752088
        %v455 = vmul.f32 %v439, %v454
        %v456 = vadd.f32 %v455, 0.112945676
        %v457 = vmul.f32 %v439, %v456
        %v458 = vadd.f32 %v457, 0.4994258
        %v459 = vmul.f32 %v439, %v458
        %v460 = vadd.f32 %v459, 1.0
        %v461 = vrcp.pop %v460
        %v462 = vmul.f32 %v460, %v461
        %v463 = vsub.f32 1.0, %v462
        %v464 = vmul.f32 %v461, %v463
        %v465 = vadd.f32 %v461, %v464
        %vm466 = vweird.f32 %v460
        %vm467 = vweird.f32 %v461
        %vm468 = vmor %vm466, %vm467
        %v469 = vsel %vm468, %v461, %v465
        %v470 = vand.u32 2147483647, %v460
        %vm471 = vcmp.eq.f32.partialorder %v470, 8.507059e+37
        %v472 = vand.u32 %v460, 2147483648
        %v473 = vor.u32 1.1754944e-38, %v472
        %v474 = vsel %vm471, %v473, %v469
        %v475 = vmul.f32 %v450, %v474
        %v476 = vmin.f32 %v475, 1.0
        %v477 = vmax.f32 %v476, -1.0
        %v478 = vadd.f32 %v477, 1.0
        %v479 = vmul.f32 %v436, %v478
        %480 = vst [vmem:[%s314] sm:$0xff] %v479
        %v481 = vld [vmem:[%s310] sm:$0xff]
        %v483 = vsel %vm345, %v481, 0
        %485 = vmatpush.msra.mxu0 0.0
        %486 = vmatpush.msra.mxu0 0.0
        %487 = vmatpush.msra.mxu0 0.0
        %488 = vmatpush.msra.mxu0 0.0
        %489 = vmatpush.msra.mxu0 0.0
        %490 = vmatpush.msra.mxu0 0.0
        %491 = vmatpush.msra.mxu0 0.0
        %492 = vmatpush.msra.mxu0 0.0
        %493 = vmatpush.msra.mxu0 0.0
        %494 = vmatpush.msra.mxu0 0.0
        %495 = vmatpush.msra.mxu0 0.0
        %496 = vmatpush.msra.mxu0 0.0
        %497 = vmatpush.msra.mxu0 %v322
        %498 = vmatpush.msra.mxu0 %v321
        %499 = vmatpush.msra.mxu0 %v320
        %500 = vmatpush.msra.mxu0 %v319
        %501 = vmatmul.f32.gmra.mxu0 %v483
        %v502 = vpop.f32.mrf.mxu0
        %v503 = vadd.f32 %v343, %v502
        %504 = vdwg.mxu0
        %v505 = vmul.f32 %v503, 0.5
        %v506 = vmul.f32 %v503, 0.70710677
        %v507 = vmul.f32 %v506, %v506
        %v508 = vmin.f32 16.0, %v507
        %v509 = vmul.f32 %v508, 2.1237322e-06
        %v510 = vadd.f32 %v509, 0.00028619796
        %v511 = vmul.f32 %v508, %v510
        %v512 = vadd.f32 %v511, 0.0036580483
        %v513 = vmul.f32 %v508, %v512
        %v514 = vadd.f32 %v513, 0.05243302
        %v515 = vmul.f32 %v508, %v514
        %v516 = vadd.f32 %v515, 0.18741608
        %v517 = vmul.f32 %v508, %v516
        %v518 = vadd.f32 %v517, 1.1283791
        %v519 = vmul.f32 %v506, %v518
        %v520 = vmul.f32 %v508, 3.8918573e-05
        %v521 = vadd.f32 %v520, 0.001143296
        %v522 = vmul.f32 %v508, %v521
        %v523 = vadd.f32 %v522, 0.014752088
        %v524 = vmul.f32 %v508, %v523
        %v525 = vadd.f32 %v524, 0.112945676
        %v526 = vmul.f32 %v508, %v525
        %v527 = vadd.f32 %v526, 0.4994258
        %v528 = vmul.f32 %v508, %v527
        %v529 = vadd.f32 %v528, 1.0
        %v530 = vrcp.pop %v529
        %v531 = vmul.f32 %v529, %v530
        %v532 = vsub.f32 1.0, %v531
        %v533 = vmul.f32 %v530, %v532
        %v534 = vadd.f32 %v530, %v533
        %vm535 = vweird.f32 %v529
        %vm536 = vweird.f32 %v530
        %vm537 = vmor %vm535, %vm536
        %v538 = vsel %vm537, %v530, %v534
        %v539 = vand.u32 2147483647, %v529
        %vm540 = vcmp.eq.f32.partialorder %v539, 8.507059e+37
        %v541 = vand.u32 %v529, 2147483648
        %v542 = vor.u32 1.1754944e-38, %v541
        %v543 = vsel %vm540, %v542, %v538
        %v544 = vmul.f32 %v519, %v543
        %v545 = vmin.f32 %v544, 1.0
        %v546 = vmax.f32 %v545, -1.0
        %v547 = vadd.f32 %v546, 1.0
        %v548 = vmul.f32 %v505, %v547
        %549 = vmatpush.msra.mxu0 %v338
        %550 = vmatpush.msra.mxu0 %v337
        %551 = vmatpush.msra.mxu0 %v336
        %552 = vmatpush.msra.mxu0 %v335
        %553 = vmatpush.msra.mxu0 %v334
        %554 = vmatpush.msra.mxu0 %v333
        %555 = vmatpush.msra.mxu0 %v332
        %556 = vmatpush.msra.mxu0 %v331
        %557 = vmatpush.msra.mxu0 %v330
        %558 = vmatpush.msra.mxu0 %v329
        %559 = vmatpush.msra.mxu0 %v328
        %560 = vmatpush.msra.mxu0 %v327
        %561 = vmatpush.msra.mxu0 %v326
        %562 = vmatpush.msra.mxu0 %v325
        %563 = vmatpush.msra.mxu0 %v324
        %564 = vmatpush.msra.mxu0 %v323
        %565 = vmatmul.f32.gmra.mxu0 %v548
        %v566 = vpop.f32.mrf.mxu0
        %v567 = vadd.f32 %v414, %v566
        %568 = vdwg.mxu0
        %v569 = vmul.f32 %v567, 0.5
        %v570 = vmul.f32 %v567, 0.70710677
        %v571 = vmul.f32 %v570, %v570
        %v572 = vmin.f32 16.0, %v571
        %v573 = vmul.f32 %v572, 2.1237322e-06
        %v574 = vadd.f32 %v573, 0.00028619796
        %v575 = vmul.f32 %v572, %v574
        %v576 = vadd.f32 %v575, 0.0036580483
        %v577 = vmul.f32 %v572, %v576
        %v578 = vadd.f32 %v577, 0.05243302
        %v579 = vmul.f32 %v572, %v578
        %v580 = vadd.f32 %v579, 0.18741608
        %v581 = vmul.f32 %v572, %v580
        %v582 = vadd.f32 %v581, 1.1283791
        %v583 = vmul.f32 %v570, %v582
        %v584 = vmul.f32 %v572, 3.8918573e-05
        %v585 = vadd.f32 %v584, 0.001143296
        %v586 = vmul.f32 %v572, %v585
        %v587 = vadd.f32 %v586, 0.014752088
        %v588 = vmul.f32 %v572, %v587
        %v589 = vadd.f32 %v588, 0.112945676
        %v590 = vmul.f32 %v572, %v589
        %v591 = vadd.f32 %v590, 0.4994258
        %v592 = vmul.f32 %v572, %v591
        %v593 = vadd.f32 %v592, 1.0
        %v594 = vrcp.pop %v593
        %v595 = vmul.f32 %v593, %v594
        %v596 = vsub.f32 1.0, %v595
        %v597 = vmul.f32 %v594, %v596
        %v598 = vadd.f32 %v594, %v597
        %vm599 = vweird.f32 %v593
        %vm600 = vweird.f32 %v594
        %vm601 = vmor %vm599, %vm600
        %v602 = vsel %vm601, %v594, %v598
        %v603 = vand.u32 2147483647, %v593
        %vm604 = vcmp.eq.f32.partialorder %v603, 8.507059e+37
        %v605 = vand.u32 %v593, 2147483648
        %v606 = vor.u32 1.1754944e-38, %v605
        %v607 = vsel %vm604, %v606, %v602
        %v608 = vmul.f32 %v583, %v607
        %v609 = vmin.f32 %v608, 1.0
        %v610 = vmax.f32 %v609, -1.0
        %v611 = vadd.f32 %v610, 1.0
        %v612 = vmul.f32 %v569, %v611
        %613 = vst [vmem:[%s318] sm:$0xff] %v612
        %p614 = scmp.lt.s32.totalorder %s20, 1
        %s615 = scalar_select %p614, %s20, 1
        %s616 = smul.addr %s615, 8
        %s617 = scalar_lea.vmem %s6, %s616
        %p618 = scmp.lt.s32.totalorder %s20, 1
        %s619 = scalar_select %p618, %s20, 1
        %s620 = smul.addr %s619, 8
        %s621 = scalar_lea.vmem %s7, %s620
        // Predicated region
        $region49: #{_xapi_compare_forward.1} parent=43 // pred_check
          %p622 = pneg %p174
        $region50: #{_xapi_compare_forward.1} parent=43 // pred_check_branch
          %624 = sbr.rel (%p622) target = $region52
        $region51: #{_xapi_compare_forward.1} parent=43 // pred_region
          _
        $region52: #{_xapi_compare_forward.1} parent=43 // pred_fallthru
          _
        // Predicated region
        $region53: #{_xapi_compare_forward.1} parent=43 // pred_check
          %p625 = pneg %p200
        $region54: #{_xapi_compare_forward.1} parent=43 // pred_check_branch
          %627 = sbr.rel (%p625) target = $region56
        $region55: #{_xapi_compare_forward.1} parent=43 // pred_region
          _
        $region56: #{_xapi_compare_forward.1} parent=43 // pred_fallthru
          _
      $region44: #{_xapi_compare_forward.1} parent=5 // pred_fallthru
        _
      %p628 = scmp.le.s32.totalorder 2, %s15
      // Predicated region
      $region57: #{_xapi_compare_forward.1} parent=5 // pred_check
        %p629 = pneg %p628
      $region58: #{_xapi_compare_forward.1} parent=5 // pred_check_branch
        %631 = sbr.rel (%p629) target = $region60
      $region59: #{_xapi_compare_forward.1} parent=5 // pred_region
        %s632 = ssub.s32 %s15, 2
        // Predicated region
        $region61: #{_xapi_compare_forward.1} parent=59 // pred_check
          %p633 = pneg %p180
        $region62: #{_xapi_compare_forward.1} parent=59 // pred_check_branch
          %635 = sbr.rel (%p633) target = $region64
        $region63: #{_xapi_compare_forward.1} parent=59 // pred_region
          %p636 = scmp.lt.s32.totalorder %s21, 1
          %s637 = scalar_select %p636, %s21, 1
          %s638 = smul.addr %s637, 8
          %s639 = scalar_lea.vmem %s6, %s638
        $region64: #{_xapi_compare_forward.1} parent=59 // pred_fallthru
          _
        // Predicated region
        $region65: #{_xapi_compare_forward.1} parent=59 // pred_check
          %p640 = pneg %p206
        $region66: #{_xapi_compare_forward.1} parent=59 // pred_check_branch
          %642 = sbr.rel (%p640) target = $region68
        $region67: #{_xapi_compare_forward.1} parent=59 // pred_region
          %p643 = scmp.lt.s32.totalorder %s21, 1
          %s644 = scalar_select %p643, %s21, 1
          %s645 = smul.addr %s644, 8
          %s646 = scalar_lea.vmem %s7, %s645
        $region68: #{_xapi_compare_forward.1} parent=59 // pred_fallthru
          _
      $region60: #{_xapi_compare_forward.1} parent=5 // pred_fallthru
        _
    $region6: #{_xapi_compare_forward.1} parent=1 // loop_footer
      %s19 = sadd.s32 1, %s15
    $region7: #{_xapi_compare_forward.1} parent=1 // loop_footer_branch
      %14 = sbr.rel target = $region3
    $region8: #{_xapi_compare_forward.1} parent=1 // loop_exit
      _
    %647 = vsyncpa [#allocation3], 1
    %s648 = scalar_lea.sflag [#allocation3], 1
    %649 = vsyncpa %s648, 1

</llo_original>
